<compile_context>
chip_gen: v7x
topology: tpu7x:2x2x1
jax: 0.10.0
libtpu: 0.0.40
codegen_flags: <defaults>
</compile_context>

<pallas_src>
import math
import functools

import jax
import jax.numpy as jnp
from jax.experimental import pallas as pl
from jax.experimental.pallas import tpu as pltpu


def _attention_kernel(x_ref, wq_ref, wk_ref, wv_ref, wp_ref, b_ref,
                      o_ref, acc_ref, *, scale):
    """One (batch b, head h) grid step: qkv proj -> softmax attn -> proj acc."""
    h = pl.program_id(1)
    last_h = pl.num_programs(1) - 1

    x = x_ref[0]                                                   # (N, C) bf16

    # Per-head q/k/v projections: lane-dense weight slabs, full-C contraction.
    q = jnp.dot(x, wq_ref[0], preferred_element_type=jnp.float32)  # (N, Dh) f32
    k = jnp.dot(x, wk_ref[0], preferred_element_type=jnp.float32)  # (N, Dh) f32
    v = jnp.dot(x, wv_ref[0], preferred_element_type=jnp.float32)  # (N, Dh) f32

    # Fold the softmax scale into q (N*Dh elems, not N*N), then feed the MXU bf16.
    qs = (q * scale).astype(jnp.bfloat16)
    kb = k.astype(jnp.bfloat16)

    # Scores + numerically-stable softmax in f32.
    s = jnp.einsum('nd,md->nm', qs, kb,
                   preferred_element_type=jnp.float32)             # (N, N) f32
    s = s - jnp.max(s, axis=-1, keepdims=True)
    e = jnp.exp(s)
    denom = jnp.sum(e, axis=-1, keepdims=True)
    attn = e * pl.reciprocal(denom, approx=True)                   # EUP divide
    # attn_drop (p=0.0): identity.

    head_out = jnp.dot(attn.astype(jnp.bfloat16), v.astype(jnp.bfloat16),
                       preferred_element_type=jnp.float32)         # (N, Dh) f32

    # Accumulate the output projection per head (K = Dh reduction, P3 pattern).
    @pl.when(h == 0)
    def _():
        acc_ref[...] = jnp.zeros_like(acc_ref)

    acc_ref[...] += jnp.dot(head_out.astype(jnp.bfloat16), wp_ref[0],
                            preferred_element_type=jnp.float32)    # (N, C) f32

    @pl.when(h == last_h)
    def _():
        # proj bias; proj_drop (p=0.0): identity.
        o_ref[0] = (acc_ref[...] + b_ref[...]).astype(o_ref.dtype)


@functools.partial(jax.jit, static_argnames=("num_heads",))
def attention_forward(x, wqkv, wproj, bproj, *, num_heads):
    """x: (B, N, C) f32; wqkv: (C, 3C); wproj: (C, C); bproj: (1, C) -> (B, N, C) f32.

    Weights are stored (in_features, out_features), i.e. the transpose of
    nn.Linear's stored weight; wqkv columns are ordered [q | k | v].
    """
    B, N, C = x.shape
    H = num_heads
    Dh = C // H
    scale = Dh ** (-0.5)          # qk_scale=None -> head_dim ** -0.5

    # One-time wrapper-side repack into per-head lane-dense slabs (bf16 for MXU).
    w = wqkv.reshape(C, 3, H, Dh).transpose(1, 2, 0, 3)            # (3, H, C, Dh)
    wq = w[0].astype(jnp.bfloat16)                                 # (H, C, Dh)
    wk = w[1].astype(jnp.bfloat16)
    wv = w[2].astype(jnp.bfloat16)
    wp = wproj.reshape(H, Dh, C).astype(jnp.bfloat16)              # (H, Dh, C)
    xb = x.astype(jnp.bfloat16)

    out = pl.pallas_call(
        functools.partial(_attention_kernel, scale=scale),
        out_shape=jax.ShapeDtypeStruct((B, N, C), jnp.float32),
        grid_spec=pltpu.PrefetchScalarGridSpec(
            num_scalar_prefetch=0,
            grid=(B, H),                                            # heads = reduction, last
            in_specs=[
                pl.BlockSpec((1, N, C), lambda b, h: (b, 0, 0)),    # x (revisited over h)
                pl.BlockSpec((1, C, Dh), lambda b, h: (h, 0, 0)),   # wq[h]
                pl.BlockSpec((1, C, Dh), lambda b, h: (h, 0, 0)),   # wk[h]
                pl.BlockSpec((1, C, Dh), lambda b, h: (h, 0, 0)),   # wv[h]
                pl.BlockSpec((1, Dh, C), lambda b, h: (h, 0, 0)),   # wproj[h]
                pl.BlockSpec((1, C), lambda b, h: (0, 0)),          # proj bias
            ],
            out_specs=pl.BlockSpec((1, N, C), lambda b, h: (b, 0, 0)),
            scratch_shapes=[pltpu.VMEM((N, C), jnp.float32)],       # out-proj accumulator
        ),
        compiler_params=pltpu.CompilerParams(
            dimension_semantics=("parallel", "arbitrary")),
    )(xb, wq, wk, wv, wp, bproj)
    return out


def attention_ref_f32(x, wqkv, wproj, bproj, *, num_heads):
    """Pure-JAX f32 reference mirroring the torch forward (weights (in, out))."""
    B, N, C = x.shape
    Dh = C // num_heads
    scale = Dh ** (-0.5)
    hp = jax.lax.Precision.HIGHEST
    qkv = jnp.einsum('bnc,cd->bnd', x, wqkv, precision=hp)          # (B, N, 3C)
    qkv = qkv.reshape(B, N, 3, num_heads, Dh).transpose(2, 0, 3, 1, 4)
    q, k, v = qkv[0], qkv[1], qkv[2]                                # (B, H, N, Dh)
    attn = jnp.einsum('bhnd,bhmd->bhnm', q, k, precision=hp) * scale
    attn = jax.nn.softmax(attn, axis=-1)
    out = jnp.einsum('bhnm,bhmd->bhnd', attn, v, precision=hp)
    out = out.transpose(0, 2, 1, 3).reshape(B, N, C)
    return jnp.einsum('bnc,cd->bnd', out, wproj, precision=hp) + bproj


def attention_ref_bf16(x, wqkv, wproj, bproj, *, num_heads):
    """Reference that mirrors the kernel's bf16 matmul-operand casting."""
    B, N, C = x.shape
    H = num_heads
    Dh = C // H
    scale = Dh ** (-0.5)
    f32 = jnp.float32
    xb = x.astype(jnp.bfloat16)
    w = wqkv.reshape(C, 3, H, Dh).transpose(1, 2, 0, 3).astype(jnp.bfloat16)
    wp = wproj.reshape(H, Dh, C).astype(jnp.bfloat16)
    out = jnp.zeros((B, N, C), f32)
    for h in range(H):
        q = jnp.einsum('bnc,cd->bnd', xb, w[0, h], preferred_element_type=f32)
        k = jnp.einsum('bnc,cd->bnd', xb, w[1, h], preferred_element_type=f32)
        v = jnp.einsum('bnc,cd->bnd', xb, w[2, h], preferred_element_type=f32)
        qs = (q * scale).astype(jnp.bfloat16)
        s = jnp.einsum('bnd,bmd->bnm', qs, k.astype(jnp.bfloat16),
                       preferred_element_type=f32)
        attn = jax.nn.softmax(s, axis=-1)
        ho = jnp.einsum('bnm,bmd->bnd', attn.astype(jnp.bfloat16),
                        v.astype(jnp.bfloat16), preferred_element_type=f32)
        out = out + jnp.einsum('bnd,dc->bnc', ho.astype(jnp.bfloat16), wp[h],
                               preferred_element_type=f32)
    return out + bproj


if __name__ == "__main__":
    # Small shapes consistent with the module: batch B=2, seq N=8, dim C=64,
    # num_heads=8 (module default) -> head_dim=8.
    B, N, C, H = 2, 8, 64, 8

    key = jax.random.PRNGKey(0)
    kx, kqkv, kp, kb = jax.random.split(key, 4)
    x = jax.random.normal(kx, (B, N, C), jnp.float32)
    wqkv = jax.random.normal(kqkv, (C, 3 * C), jnp.float32) / math.sqrt(C)
    wproj = jax.random.normal(kp, (C, C), jnp.float32) / math.sqrt(C)
    bproj = 0.01 * jax.random.normal(kb, (1, C), jnp.float32)

    out = attention_forward(x, wqkv, wproj, bproj, num_heads=H)
    out = jax.block_until_ready(out)

    ref_bf16 = attention_ref_bf16(x, wqkv, wproj, bproj, num_heads=H)
    ref_f32 = attention_ref_f32(x, wqkv, wproj, bproj, num_heads=H)

    assert out.shape == (B, N, C)
    assert bool(jnp.all(jnp.isfinite(out)))
    # Tight check against a reference that mirrors the kernel's bf16 casting,
    # plus a looser sanity check against the full-precision reference.
    assert bool(jnp.allclose(out, ref_bf16, atol=1e-2, rtol=1e-2))
    assert bool(jnp.allclose(out, ref_f32, atol=5e-2, rtol=5e-2))
    print("KERNEL_OK")
</pallas_src>

<mosaic_0001>
module attributes {stable_mosaic.version = 11 : i64} {
  func.func @_attention_kernel(%arg0: i32, %arg1: i32, %arg2: memref<1x8x64xbf16, #tpu.memory_space<vmem>>, %arg3: memref<1x64x8xbf16, #tpu.memory_space<vmem>>, %arg4: memref<1x64x8xbf16, #tpu.memory_space<vmem>>, %arg5: memref<1x64x8xbf16, #tpu.memory_space<vmem>>, %arg6: memref<1x8x64xbf16, #tpu.memory_space<vmem>>, %arg7: memref<1x64xf32, #tpu.memory_space<vmem>>, %arg8: memref<1x8x64xf32, #tpu.memory_space<vmem>>, %arg9: memref<8x64xf32, #tpu.memory_space<vmem>>) attributes {dimension_semantics = [#tpu.dimension_semantics<parallel>, #tpu.dimension_semantics<arbitrary>], iteration_bounds = array<i64: 2, 8>, scalar_prefetch = 0 : i64, scratch_operands = 1 : i64, tpu.core_type = #tpu.core_type<tc>, window_params = [{transform_indices = @transform_0, window_bounds = array<i64: 1, 8, 64>}, {transform_indices = @transform_1, window_bounds = array<i64: 1, 64, 8>}, {transform_indices = @transform_2, window_bounds = array<i64: 1, 64, 8>}, {transform_indices = @transform_3, window_bounds = array<i64: 1, 64, 8>}, {transform_indices = @transform_4, window_bounds = array<i64: 1, 8, 64>}, {pipeline_mode = #tpu.pipeline_mode<synchronous>, transform_indices = @transform_5, window_bounds = array<i64: 1, 64>}, {transform_indices = @transform_6, window_bounds = array<i64: 1, 8, 64>}]} {
    %c0 = arith.constant 0 : index
    %c0_0 = arith.constant 0 : index
    %c0_1 = arith.constant 0 : index
    %0 = vector.load %arg2[%c0, %c0_0, %c0_1] : memref<1x8x64xbf16, #tpu.memory_space<vmem>>, vector<1x8x64xbf16>
    %1 = vector.shape_cast %0 : vector<1x8x64xbf16> to vector<8x64xbf16>
    %c0_2 = arith.constant 0 : index
    %c0_3 = arith.constant 0 : index
    %c0_4 = arith.constant 0 : index
    %2 = vector.load %arg3[%c0_2, %c0_3, %c0_4] : memref<1x64x8xbf16, #tpu.memory_space<vmem>>, vector<1x64x8xbf16>
    %3 = vector.shape_cast %2 : vector<1x64x8xbf16> to vector<64x8xbf16>
    %cst = arith.constant dense<0.000000e+00> : vector<8x8xf32>
    %4 = tpu.matmul %1, %3, %cst {dimension_numbers = #tpu.dot_dimension_numbers<[1], [0], [0], [1], [0, 0, 1, 1], [], []>} : vector<8x64xbf16>, vector<64x8xbf16>, vector<8x8xf32> -> vector<8x8xf32>
    %c0_5 = arith.constant 0 : index
    %c0_6 = arith.constant 0 : index
    %c0_7 = arith.constant 0 : index
    %5 = vector.load %arg4[%c0_5, %c0_6, %c0_7] : memref<1x64x8xbf16, #tpu.memory_space<vmem>>, vector<1x64x8xbf16>
    %6 = vector.shape_cast %5 : vector<1x64x8xbf16> to vector<64x8xbf16>
    %cst_8 = arith.constant dense<0.000000e+00> : vector<8x8xf32>
    %7 = tpu.matmul %1, %6, %cst_8 {dimension_numbers = #tpu.dot_dimension_numbers<[1], [0], [0], [1], [0, 0, 1, 1], [], []>} : vector<8x64xbf16>, vector<64x8xbf16>, vector<8x8xf32> -> vector<8x8xf32>
    %c0_9 = arith.constant 0 : index
    %c0_10 = arith.constant 0 : index
    %c0_11 = arith.constant 0 : index
    %8 = vector.load %arg5[%c0_9, %c0_10, %c0_11] : memref<1x64x8xbf16, #tpu.memory_space<vmem>>, vector<1x64x8xbf16>
    %9 = vector.shape_cast %8 : vector<1x64x8xbf16> to vector<64x8xbf16>
    %cst_12 = arith.constant dense<0.000000e+00> : vector<8x8xf32>
    %10 = tpu.matmul %1, %9, %cst_12 {dimension_numbers = #tpu.dot_dimension_numbers<[1], [0], [0], [1], [0, 0, 1, 1], [], []>} : vector<8x64xbf16>, vector<64x8xbf16>, vector<8x8xf32> -> vector<8x8xf32>
    %cst_13 = arith.constant 0.353553385 : f32
    %11 = vector.broadcast %cst_13 : f32 to vector<8x8xf32>
    %12 = arith.mulf %4, %11 : vector<8x8xf32>
    %13 = arith.truncf %12 : vector<8x8xf32> to vector<8x8xbf16>
    %14 = arith.truncf %7 : vector<8x8xf32> to vector<8x8xbf16>
    "tpu.trace_start"() <{level = 10 : i32, message = "nd,md->nm"}> : () -> ()
    %cst_14 = arith.constant dense<0.000000e+00> : vector<8x8xf32>
    %15 = tpu.matmul %13, %14, %cst_14 {dimension_numbers = #tpu.dot_dimension_numbers<[1], [1], [0], [0], [0, 0, 1, 0], [], []>} : vector<8x8xbf16>, vector<8x8xbf16>, vector<8x8xf32> -> vector<8x8xf32>
    "tpu.trace_stop"() : () -> ()
    %cst_15 = arith.constant dense<0xFF800000> : vector<8xf32>
    %16 = vector.multi_reduction <maximumf>, %15, %cst_15 [1] : vector<8x8xf32> to vector<8xf32>
    %17 = vector.shape_cast %16 : vector<8xf32> to vector<8x1xf32>
    %18 = vector.broadcast %17 : vector<8x1xf32> to vector<8x8xf32>
    %19 = arith.subf %15, %18 : vector<8x8xf32>
    %20 = math.exp %19 : vector<8x8xf32>
    %cst_16 = arith.constant dense<0.000000e+00> : vector<8xf32>
    %21 = vector.multi_reduction <add>, %20, %cst_16 [1] : vector<8x8xf32> to vector<8xf32>
    %22 = vector.shape_cast %21 : vector<8xf32> to vector<8x1xf32>
    %23 = tpu.reciprocal %22 {approx = true} : vector<8x1xf32> -> vector<8x1xf32>
    %24 = vector.broadcast %23 : vector<8x1xf32> to vector<8x8xf32>
    %25 = arith.mulf %20, %24 : vector<8x8xf32>
    %26 = arith.truncf %25 : vector<8x8xf32> to vector<8x8xbf16>
    %27 = arith.truncf %10 : vector<8x8xf32> to vector<8x8xbf16>
    %cst_17 = arith.constant dense<0.000000e+00> : vector<8x8xf32>
    %28 = tpu.matmul %26, %27, %cst_17 {dimension_numbers = #tpu.dot_dimension_numbers<[1], [0], [0], [1], [0, 0, 1, 1], [], []>} : vector<8x8xbf16>, vector<8x8xbf16>, vector<8x8xf32> -> vector<8x8xf32>
    %c0_i32 = arith.constant 0 : i32
    %29 = arith.cmpi eq, %arg1, %c0_i32 : i32
    %30 = arith.extui %29 : i1 to i32
    %c0_i32_18 = arith.constant 0 : i32
    %31 = arith.cmpi ne, %30, %c0_i32_18 : i32
    scf.if %31 {
      %cst_28 = arith.constant 0.000000e+00 : f32
      %42 = vector.broadcast %cst_28 : f32 to vector<8x64xf32>
      %c0_29 = arith.constant 0 : index
      %c0_30 = arith.constant 0 : index
      %43 = vector.load %arg9[%c0_29, %c0_30] : memref<8x64xf32, #tpu.memory_space<vmem>>, vector<8x64xf32>
      tpu.vector_store %arg9[%c0_29, %c0_30], %42 {strides = array<i32>} : memref<8x64xf32, #tpu.memory_space<vmem>>, vector<8x64xf32>,
    } else {
    }
    %c0_19 = arith.constant 0 : index
    %c0_20 = arith.constant 0 : index
    %32 = vector.load %arg9[%c0_19, %c0_20] : memref<8x64xf32, #tpu.memory_space<vmem>>, vector<8x64xf32>
    %33 = arith.truncf %28 : vector<8x8xf32> to vector<8x8xbf16>
    %c0_21 = arith.constant 0 : index
    %c0_22 = arith.constant 0 : index
    %c0_23 = arith.constant 0 : index
    %34 = vector.load %arg6[%c0_21, %c0_22, %c0_23] : memref<1x8x64xbf16, #tpu.memory_space<vmem>>, vector<1x8x64xbf16>
    %35 = vector.shape_cast %34 : vector<1x8x64xbf16> to vector<8x64xbf16>
    %cst_24 = arith.constant dense<0.000000e+00> : vector<8x64xf32>
    %36 = tpu.matmul %33, %35, %cst_24 {dimension_numbers = #tpu.dot_dimension_numbers<[1], [0], [0], [1], [0, 0, 1, 1], [], []>} : vector<8x8xbf16>, vector<8x64xbf16>, vector<8x64xf32> -> vector<8x64xf32>
    %37 = arith.addf %32, %36 : vector<8x64xf32>
    %c0_25 = arith.constant 0 : index
    %c0_26 = arith.constant 0 : index
    %38 = vector.load %arg9[%c0_25, %c0_26] : memref<8x64xf32, #tpu.memory_space<vmem>>, vector<8x64xf32>
    tpu.vector_store %arg9[%c0_25, %c0_26], %37 {strides = array<i32>} : memref<8x64xf32, #tpu.memory_space<vmem>>, vector<8x64xf32>,
    %c7_i32 = arith.constant 7 : i32
    %39 = arith.cmpi eq, %arg1, %c7_i32 : i32
    %40 = arith.extui %39 : i1 to i32
    %c0_i32_27 = arith.constant 0 : i32
    %41 = arith.cmpi ne, %40, %c0_i32_27 : i32
    scf.if %41 {
      %c0_28 = arith.constant 0 : index
      %c0_29 = arith.constant 0 : index
      %42 = vector.load %arg9[%c0_28, %c0_29] : memref<8x64xf32, #tpu.memory_space<vmem>>, vector<8x64xf32>
      %c0_30 = arith.constant 0 : index
      %c0_31 = arith.constant 0 : index
      %43 = vector.load %arg7[%c0_30, %c0_31] : memref<1x64xf32, #tpu.memory_space<vmem>>, vector<1x64xf32>
      %44 = vector.broadcast %43 : vector<1x64xf32> to vector<8x64xf32>
      %45 = arith.addf %42, %44 : vector<8x64xf32>
      %c0_32 = arith.constant 0 : index
      %c0_33 = arith.constant 0 : index
      %c0_34 = arith.constant 0 : index
      %46 = vector.load %arg8[%c0_32, %c0_33, %c0_34] : memref<1x8x64xf32, #tpu.memory_space<vmem>>, vector<1x8x64xf32>
      %47 = vector.shape_cast %46 : vector<1x8x64xf32> to vector<8x64xf32>
      %48 = vector.shape_cast %45 : vector<8x64xf32> to vector<1x8x64xf32>
      tpu.vector_store %arg8[%c0_32, %c0_33, %c0_34], %48 {strides = array<i32>} : memref<1x8x64xf32, #tpu.memory_space<vmem>>, vector<1x8x64xf32>,
    } else {
    }
    return
  }
  func.func @transform_0(%arg0: i32, %arg1: i32) -> (i32, i32, i32) {
    %c0_i32 = arith.constant 0 : i32
    %c0_i32_0 = arith.constant 0 : i32
    %c0_i32_1 = arith.constant 0 : i32
    return %arg0, %c0_i32, %c0_i32_0 : i32, i32, i32
  }
  func.func @transform_1(%arg0: i32, %arg1: i32) -> (i32, i32, i32) {
    %c0_i32 = arith.constant 0 : i32
    %c0_i32_0 = arith.constant 0 : i32
    %c0_i32_1 = arith.constant 0 : i32
    return %arg1, %c0_i32, %c0_i32_0 : i32, i32, i32
  }
  func.func @transform_2(%arg0: i32, %arg1: i32) -> (i32, i32, i32) {
    %c0_i32 = arith.constant 0 : i32
    %c0_i32_0 = arith.constant 0 : i32
    %c0_i32_1 = arith.constant 0 : i32
    return %arg1, %c0_i32, %c0_i32_0 : i32, i32, i32
  }
  func.func @transform_3(%arg0: i32, %arg1: i32) -> (i32, i32, i32) {
    %c0_i32 = arith.constant 0 : i32
    %c0_i32_0 = arith.constant 0 : i32
    %c0_i32_1 = arith.constant 0 : i32
    return %arg1, %c0_i32, %c0_i32_0 : i32, i32, i32
  }
  func.func @transform_4(%arg0: i32, %arg1: i32) -> (i32, i32, i32) {
    %c0_i32 = arith.constant 0 : i32
    %c0_i32_0 = arith.constant 0 : i32
    %c0_i32_1 = arith.constant 0 : i32
    return %arg1, %c0_i32, %c0_i32_0 : i32, i32, i32
  }
  func.func @transform_5(%arg0: i32, %arg1: i32) -> (i32, i32) {
    %c0_i32 = arith.constant 0 : i32
    %c0_i32_0 = arith.constant 0 : i32
    %c0_i32_1 = arith.constant 0 : i32
    return %c0_i32, %c0_i32_0 : i32, i32
  }
  func.func @transform_6(%arg0: i32, %arg1: i32) -> (i32, i32, i32) {
    %c0_i32 = arith.constant 0 : i32
    %c0_i32_0 = arith.constant 0 : i32
    %c0_i32_1 = arith.constant 0 : i32
    return %arg0, %c0_i32, %c0_i32_0 : i32, i32, i32
  }
}

</mosaic_0001>

<llo_original>
// kernel: attention_forward.1
$region0: #{attention_forward.1}
  #allocation0 [shape = 'u32[]', space=smem, size = 0x4, offset = 0x4, fixed_abs, tag = 'smem constant byte address 0x4 - core index']
  #allocation1 [shape = 'u32[144,128]{1,0:T(1,128)}', space=vmem, size = 0x12000, scoped, tag = 'internal scratch']
  #allocation2 [shape = 'f32[8,64]{1,0:T(8,128)}', space=vmem, size = 0x1000, scoped, tag = 'scratch operand']
  %s0 = inlined_call_operand.vmem [shape: bf16[2,8,64], index: 0, kind: input, shape index: {}]
  %s1 = inlined_call_operand.vmem [shape: bf16[8,64,8], index: 1, kind: input, shape index: {}]
  %s2 = inlined_call_operand.vmem [shape: bf16[8,64,8], index: 2, kind: input, shape index: {}]
  %s3 = inlined_call_operand.vmem [shape: bf16[8,64,8], index: 3, kind: input, shape index: {}]
  %s4 = inlined_call_operand.vmem [shape: bf16[8,8,64], index: 4, kind: input, shape index: {}]
  %s5 = inlined_call_operand.vmem [shape: f32[1,64], index: 5, kind: input, shape index: {}]
  %s6 = inlined_call_operand.hbm [shape: f32[2,8,64], index: 6, kind: output, shape index: {}]
  %s7 = sld [smem:[#allocation0]]
  $region65: #{attention_forward.1} parent=0
    _
  %s9 = ssub.s32 1, %s7
  %s10 = scalar_select 0, %s9, %s7
  $region1: #{attention_forward.1} parent=0
    #allocation3 [shape = 'u8[8192]{0}', space=vmem, size = 0x2000, scoped, tag = 'output window, operand 0']
    #allocation4 [shape = 's32[2]{0}', space=sflag, size = 0x8, scoped, tag = 'scoped memory for attention_forward.1']
    %11 = vsyncpa [#allocation4], 0
    %s12 = scalar_lea.sflag [#allocation4], 1
    %13 = vsyncpa %s12, 0
    loop: start=0, step=1, limit=18
    $region2: #{attention_forward.1} parent=1 // loop_pre_header
      _
    $region3: #{attention_forward.1} parent=1 // loop_header
      %s15 = sphi 0, %s19
      %p16 = scmp.ge.s32.totalorder %s15, 18
      %s22 = sphi 0, %s34
      %s23 = sphi 0, %s30
      %s24 = sphi 0, %s22
      %s25 = sphi 0, %s23
      %s26 = sphi 0, %s24
      %s27 = sphi 0, %s25
      %s37 = sphi 0, %s39
      %s40 = sphi 0, %s37
      %s41 = sphi 0, %s40
      %s57 = sphi 0, %s41
      %s63 = sphi 0, %s65
      %s66 = sphi 0, %s63
      %s67 = sphi 0, %s66
      %s83 = sphi 0, %s67
      %s89 = sphi 0, %s91
      %s92 = sphi 0, %s89
      %s93 = sphi 0, %s92
      %s109 = sphi 0, %s93
      %s115 = sphi 0, %s117
      %s118 = sphi 0, %s115
      %s119 = sphi 0, %s118
      %s135 = sphi 0, %s119
      %s141 = sphi 0, %s143
      %s144 = sphi 0, %s141
      %s145 = sphi 0, %s144
      %s161 = sphi 0, %s145
      %s165 = sphi 0, %s165
      %s167 = sphi 0, %s165
      %s168 = sphi 0, %s167
      %s182 = sphi 0, %s168
      %s188 = sphi 0, %s190
      %s191 = sphi 0, %s188
      %s192 = sphi 0, %s191
      %s208 = sphi 0, %s192
    $region4: #{attention_forward.1} parent=1 // loop_header_branch
      %18 = sbr.rel (%p16) target = $region8
    $region5: #{attention_forward.1} parent=1 // loop_body
      %s20 = ssub.s32 %s15, 1
      %s21 = ssub.s32 %s15, 2
      %s28 = sadd.s32 1, %s23
      %p29 = scmp.ge.s32.totalorder %s28, 8
      %s30 = scalar_select %p29, 0, %s28
      %s31 = sadd.s32 1, %s22
      %s32 = scalar_select %p29, %s31, %s22
      %p33 = scmp.ge.s32.totalorder %s32, 2
      %s34 = scalar_select %p33, 0, %s32
      %s35 = ssub.s32 %s22, %s34
      %p36 = scmp.eq.s32.totalorder %s35, 0
      %s38 = sadd.s32 %s37, 1
      %s39 = scalar_select %p36, %s37, %s38
      %p42 = pneg %p36
      %p43 = scmp.eq.s32.totalorder %s15, 15
      %p44 = por %p42, %p43
      %p45 = scmp.ne.s32.totalorder %s37, %s40
      %p46 = scmp.eq.s32.totalorder %s15, 0
      %p47 = por %p45, %p46
      %p48 = scmp.ne.s32.totalorder %s37, %s40
      %p49 = scmp.eq.s32.totalorder %s20, 15
      %p50 = por %p48, %p49
      %p51 = scmp.ne.s32.totalorder %s40, %s41
      %p52 = scmp.eq.s32.totalorder %s20, 0
      %p53 = por %p51, %p52
      %p54 = scmp.ne.s32.totalorder %s40, %s41
      %p55 = scmp.eq.s32.totalorder %s21, 15
      %p56 = por %p54, %p55
      %p58 = scmp.ne.s32.totalorder %s41, %s57
      %p59 = scmp.eq.s32.totalorder %s21, 0
      %p60 = por %p58, %p59
      %s61 = ssub.s32 %s23, %s30
      %p62 = scmp.eq.s32.totalorder %s61, 0
      %s64 = sadd.s32 %s63, 1
      %s65 = scalar_select %p62, %s63, %s64
      %p68 = pneg %p62
      %p69 = scmp.eq.s32.totalorder %s15, 15
      %p70 = por %p68, %p69
      %p71 = scmp.ne.s32.totalorder %s63, %s66
      %p72 = scmp.eq.s32.totalorder %s15, 0
      %p73 = por %p71, %p72
      %p74 = scmp.ne.s32.totalorder %s63, %s66
      %p75 = scmp.eq.s32.totalorder %s20, 15
      %p76 = por %p74, %p75
      %p77 = scmp.ne.s32.totalorder %s66, %s67
      %p78 = scmp.eq.s32.totalorder %s20, 0
      %p79 = por %p77, %p78
      %p80 = scmp.ne.s32.totalorder %s66, %s67
      %p81 = scmp.eq.s32.totalorder %s21, 15
      %p82 = por %p80, %p81
      %p84 = scmp.ne.s32.totalorder %s67, %s83
      %p85 = scmp.eq.s32.totalorder %s21, 0
      %p86 = por %p84, %p85
      %s87 = ssub.s32 %s23, %s30
      %p88 = scmp.eq.s32.totalorder %s87, 0
      %s90 = sadd.s32 %s89, 1
      %s91 = scalar_select %p88, %s89, %s90
      %p94 = pneg %p88
      %p95 = scmp.eq.s32.totalorder %s15, 15
      %p96 = por %p94, %p95
      %p97 = scmp.ne.s32.totalorder %s89, %s92
      %p98 = scmp.eq.s32.totalorder %s15, 0
      %p99 = por %p97, %p98
      %p100 = scmp.ne.s32.totalorder %s89, %s92
      %p101 = scmp.eq.s32.totalorder %s20, 15
      %p102 = por %p100, %p101
      %p103 = scmp.ne.s32.totalorder %s92, %s93
      %p104 = scmp.eq.s32.totalorder %s20, 0
      %p105 = por %p103, %p104
      %p106 = scmp.ne.s32.totalorder %s92, %s93
      %p107 = scmp.eq.s32.totalorder %s21, 15
      %p108 = por %p106, %p107
      %p110 = scmp.ne.s32.totalorder %s93, %s109
      %p111 = scmp.eq.s32.totalorder %s21, 0
      %p112 = por %p110, %p111
      %s113 = ssub.s32 %s23, %s30
      %p114 = scmp.eq.s32.totalorder %s113, 0
      %s116 = sadd.s32 %s115, 1
      %s117 = scalar_select %p114, %s115, %s116
      %p120 = pneg %p114
      %p121 = scmp.eq.s32.totalorder %s15, 15
      %p122 = por %p120, %p121
      %p123 = scmp.ne.s32.totalorder %s115, %s118
      %p124 = scmp.eq.s32.totalorder %s15, 0
      %p125 = por %p123, %p124
      %p126 = scmp.ne.s32.totalorder %s115, %s118
      %p127 = scmp.eq.s32.totalorder %s20, 15
      %p128 = por %p126, %p127
      %p129 = scmp.ne.s32.totalorder %s118, %s119
      %p130 = scmp.eq.s32.totalorder %s20, 0
      %p131 = por %p129, %p130
      %p132 = scmp.ne.s32.totalorder %s118, %s119
      %p133 = scmp.eq.s32.totalorder %s21, 15
      %p134 = por %p132, %p133
      %p136 = scmp.ne.s32.totalorder %s119, %s135
      %p137 = scmp.eq.s32.totalorder %s21, 0
      %p138 = por %p136, %p137
      %s139 = ssub.s32 %s23, %s30
      %p140 = scmp.eq.s32.totalorder %s139, 0
      %s142 = sadd.s32 %s141, 1
      %s143 = scalar_select %p140, %s141, %s142
      %p146 = pneg %p140
      %p147 = scmp.eq.s32.totalorder %s15, 15
      %p148 = por %p146, %p147
      %p149 = scmp.ne.s32.totalorder %s141, %s144
      %p150 = scmp.eq.s32.totalorder %s15, 0
      %p151 = por %p149, %p150
      %p152 = scmp.ne.s32.totalorder %s141, %s144
      %p153 = scmp.eq.s32.totalorder %s20, 15
      %p154 = por %p152, %p153
      %p155 = scmp.ne.s32.totalorder %s144, %s145
      %p156 = scmp.eq.s32.totalorder %s20, 0
      %p157 = por %p155, %p156
      %p158 = scmp.ne.s32.totalorder %s144, %s145
      %p159 = scmp.eq.s32.totalorder %s21, 15
      %p160 = por %p158, %p159
      %p162 = scmp.ne.s32.totalorder %s145, %s161
      %p163 = scmp.eq.s32.totalorder %s21, 0
      %p164 = por %p162, %p163
      %s166 = sadd.s32 %s165, 1
      %p169 = scmp.eq.s32.totalorder %s15, 15
      %p170 = scmp.ne.s32.totalorder %s165, %s167
      %p171 = scmp.eq.s32.totalorder %s15, 0
      %p172 = por %p170, %p171
      %p173 = scmp.ne.s32.totalorder %s165, %s167
      %p174 = scmp.eq.s32.totalorder %s20, 15
      %p175 = por %p173, %p174
      %p176 = scmp.ne.s32.totalorder %s167, %s168
      %p177 = scmp.eq.s32.totalorder %s20, 0
      %p178 = por %p176, %p177
      %p179 = scmp.ne.s32.totalorder %s167, %s168
      %p180 = scmp.eq.s32.totalorder %s21, 15
      %p181 = por %p179, %p180
      %p183 = scmp.ne.s32.totalorder %s168, %s182
      %p184 = scmp.eq.s32.totalorder %s21, 0
      %p185 = por %p183, %p184
      %s186 = ssub.s32 %s22, %s34
      %p187 = scmp.eq.s32.totalorder %s186, 0
      %s189 = sadd.s32 %s188, 1
      %s190 = scalar_select %p187, %s188, %s189
      %p193 = pneg %p187
      %p194 = scmp.eq.s32.totalorder %s15, 15
      %p195 = por %p193, %p194
      %p196 = scmp.ne.s32.totalorder %s188, %s191
      %p197 = scmp.eq.s32.totalorder %s15, 0
      %p198 = por %p196, %p197
      %p199 = scmp.ne.s32.totalorder %s188, %s191
      %p200 = scmp.eq.s32.totalorder %s20, 15
      %p201 = por %p199, %p200
      %p202 = scmp.ne.s32.totalorder %s191, %s192
      %p203 = scmp.eq.s32.totalorder %s20, 0
      %p204 = por %p202, %p203
      %p205 = scmp.ne.s32.totalorder %s191, %s192
      %p206 = scmp.eq.s32.totalorder %s21, 15
      %p207 = por %p205, %p206
      %p209 = scmp.ne.s32.totalorder %s192, %s208
      %p210 = scmp.eq.s32.totalorder %s21, 0
      %p211 = por %p209, %p210
      %p212 = scmp.le.s32.totalorder 1, %s15
      %p213 = scmp.lt.s32.totalorder %s15, 17
      %p214 = pnand %p212, %p213
      %p215 = pneg %p214
      // Predicated region
      $region9: #{attention_forward.1} parent=5 // pred_check
        _
      $region10: #{attention_forward.1} parent=5 // pred_check_branch
        %217 = sbr.rel (%p214) target = $region12
      $region11: #{attention_forward.1} parent=5 // pred_region
        %s218 = ssub.s32 %s15, 1
        // Predicated region
        $region13: #{attention_forward.1} parent=11 // pred_check
          %p219 = pneg %p178
        $region14: #{attention_forward.1} parent=11 // pred_check_branch
          %221 = sbr.rel (%p219) target = $region16
        $region15: #{attention_forward.1} parent=11 // pred_region
          _
        $region16: #{attention_forward.1} parent=11 // pred_fallthru
          _
      $region12: #{attention_forward.1} parent=5 // pred_fallthru
        _
      %p222 = scmp.lt.s32.totalorder %s15, 16
      // Predicated region
      $region17: #{attention_forward.1} parent=5 // pred_check
        %p223 = pneg %p222
      $region18: #{attention_forward.1} parent=5 // pred_check_branch
        %225 = sbr.rel (%p223) target = $region20
      $region19: #{attention_forward.1} parent=5 // pred_region
        // Predicated region
        $region21: #{attention_forward.1} parent=19 // pred_check
          %p226 = pneg %p47
        $region22: #{attention_forward.1} parent=19 // pred_check_branch
          %228 = sbr.rel (%p226) target = $region24
        $region23: #{attention_forward.1} parent=19 // pred_region
          %p229 = scmp.lt.s32.totalorder %s22, 1
          %s230 = scalar_select %p229, %s22, 1
          %s231 = smul.addr %s230, 4
          %s232 = scalar_lea.vmem %s0, %s231
        $region24: #{attention_forward.1} parent=19 // pred_fallthru
          _
        // Predicated region
        $region25: #{attention_forward.1} parent=19 // pred_check
          %p233 = pneg %p73
        $region26: #{attention_forward.1} parent=19 // pred_check_branch
          %235 = sbr.rel (%p233) target = $region28
        $region27: #{attention_forward.1} parent=19 // pred_region
          %p236 = scmp.lt.s32.totalorder %s23, 7
          %s237 = scalar_select %p236, %s23, 7
          %s238 = smul.addr %s237, 8
          %s239 = smul.addr %s238, 4
          %s240 = scalar_lea.vmem %s1, %s239
        $region28: #{attention_forward.1} parent=19 // pred_fallthru
          _
        // Predicated region
        $region29: #{attention_forward.1} parent=19 // pred_check
          %p241 = pneg %p99
        $region30: #{attention_forward.1} parent=19 // pred_check_branch
          %243 = sbr.rel (%p241) target = $region32
        $region31: #{attention_forward.1} parent=19 // pred_region
          %p244 = scmp.lt.s32.totalorder %s23, 7
          %s245 = scalar_select %p244, %s23, 7
          %s246 = smul.addr %s245, 8
          %s247 = smul.addr %s246, 4
          %s248 = scalar_lea.vmem %s2, %s247
        $region32: #{attention_forward.1} parent=19 // pred_fallthru
          _
        // Predicated region
        $region33: #{attention_forward.1} parent=19 // pred_check
          %p249 = pneg %p125
        $region34: #{attention_forward.1} parent=19 // pred_check_branch
          %251 = sbr.rel (%p249) target = $region36
        $region35: #{attention_forward.1} parent=19 // pred_region
          %p252 = scmp.lt.s32.totalorder %s23, 7
          %s253 = scalar_select %p252, %s23, 7
          %s254 = smul.addr %s253, 8
          %s255 = smul.addr %s254, 4
          %s256 = scalar_lea.vmem %s3, %s255
        $region36: #{attention_forward.1} parent=19 // pred_fallthru
          _
        // Predicated region
        $region37: #{attention_forward.1} parent=19 // pred_check
          %p257 = pneg %p151
        $region38: #{attention_forward.1} parent=19 // pred_check_branch
          %259 = sbr.rel (%p257) target = $region40
        $region39: #{attention_forward.1} parent=19 // pred_region
          %p260 = scmp.lt.s32.totalorder %s23, 7
          %s261 = scalar_select %p260, %s23, 7
          %s262 = smul.addr %s261, 4
          %s263 = scalar_lea.vmem %s4, %s262
        $region40: #{attention_forward.1} parent=19 // pred_fallthru
          _
      $region20: #{attention_forward.1} parent=5 // pred_fallthru
        _
      %p264 = scmp.le.s32.totalorder 1, %s15
      %p265 = scmp.lt.s32.totalorder %s15, 17
      %p266 = pnand %p264, %p265
      %p267 = pneg %p266
      // Predicated region
      $region41: #{attention_forward.1} parent=5 // pred_check
        _
      $region42: #{attention_forward.1} parent=5 // pred_check_branch
        %269 = sbr.rel (%p266) target = $region44
      $region43: #{attention_forward.1} parent=5 // pred_region
        %s270 = ssub.s32 %s15, 1
        %p271 = scmp.lt.s32.totalorder %s24, 1
        %s272 = scalar_select %p271, %s24, 1
        %s273 = smul.addr %s272, 4
        %s274 = scalar_lea.vmem %s0, %s273
        %p275 = pneg %p53
        %p276 = pneg %p50
        %p277 = scmp.lt.s32.totalorder %s25, 7
        %s278 = scalar_select %p277, %s25, 7
        %s279 = smul.addr %s278, 8
        %s280 = smul.addr %s279, 4
        %s281 = scalar_lea.vmem %s1, %s280
        %p282 = pneg %p79
        %p283 = pneg %p76
        %p284 = scmp.lt.s32.totalorder %s25, 7
        %s285 = scalar_select %p284, %s25, 7
        %s286 = smul.addr %s285, 8
        %s287 = smul.addr %s286, 4
        %s288 = scalar_lea.vmem %s2, %s287
        %p289 = pneg %p105
        %p290 = pneg %p102
        %p291 = scmp.lt.s32.totalorder %s25, 7
        %s292 = scalar_select %p291, %s25, 7
        %s293 = smul.addr %s292, 8
        %s294 = smul.addr %s293, 4
        %s295 = scalar_lea.vmem %s3, %s294
        %p296 = pneg %p131
        %p297 = pneg %p128
        %p298 = scmp.lt.s32.totalorder %s25, 7
        %s299 = scalar_select %p298, %s25, 7
        %s300 = smul.addr %s299, 4
        %s301 = scalar_lea.vmem %s4, %s300
        %p302 = pneg %p157
        %p303 = pneg %p154
        %p304 = pneg %p178
        %p305 = pneg %p175
        %p306 = pneg %p204
        %p307 = pneg %p201
        %s308 = sand.u32 %s191, 1
        %s309 = scalar_lea.sflag [#allocation4], %s308
        %s310 = sand.u32 %s191, 1
        %s311 = smul.addr %s310, 8
        %s312 = scalar_lea.vmem [#allocation3], %s311
        %p313 = scmp.lt.s32.totalorder %s24, 1
        %s314 = scalar_select %p313, %s24, 1
        %s315 = smul.addr %s314, 4
        %s316 = scalar_lea.vmem %s0, %s315
        %p317 = scmp.lt.s32.totalorder %s25, 7
        %s318 = scalar_select %p317, %s25, 7
        %s319 = smul.addr %s318, 8
        %s320 = smul.addr %s319, 4
        %s321 = scalar_lea.vmem %s1, %s320
        %p322 = scmp.lt.s32.totalorder %s25, 7
        %s323 = scalar_select %p322, %s25, 7
        %s324 = smul.addr %s323, 8
        %s325 = smul.addr %s324, 4
        %s326 = scalar_lea.vmem %s2, %s325
        %p327 = scmp.lt.s32.totalorder %s25, 7
        %s328 = scalar_select %p327, %s25, 7
        %s329 = smul.addr %s328, 8
        %s330 = smul.addr %s329, 4
        %s331 = scalar_lea.vmem %s3, %s330
        %p332 = scmp.lt.s32.totalorder %s25, 7
        %s333 = scalar_select %p332, %s25, 7
        %s334 = smul.addr %s333, 4
        %s335 = scalar_lea.vmem %s4, %s334
        %v337 = vld [vmem:[%s316] sm:$0xf]
        %v338 = vld [vmem:[%s321] sm:$0xf]
        %v339 = vld [vmem:[%s321 + $0x4] sm:$0xf]
        %v340 = vld [vmem:[%s321 + $0x8] sm:$0xf]
        %v341 = vld [vmem:[%s321 + $0xc] sm:$0xf]
        %v342 = vld [vmem:[%s321 + $0x10] sm:$0xf]
        %v343 = vld [vmem:[%s321 + $0x14] sm:$0xf]
        %v344 = vld [vmem:[%s321 + $0x18] sm:$0xf]
        %v345 = vld [vmem:[%s321 + $0x1c] sm:$0xf]
        %v354 = vunpack.c.l.b16 %v338
        %v355 = vunpack.c.l.b16 %v339
        %v356 = vunpack.c.l.b16 %v340
        %v357 = vunpack.c.l.b16 %v341
        %v358 = vunpack.c.l.b16 %v342
        %v359 = vunpack.c.l.b16 %v343
        %v360 = vunpack.c.l.b16 %v344
        %v361 = vunpack.c.l.b16 %v345
        %v362 = vpack.c.b16 %v355, %v354
        %v363 = vpack.c.b16 %v357, %v356
        %v364 = vpack.c.b16 %v359, %v358
        %v365 = vpack.c.b16 %v361, %v360
        %vm370 = vcmask 523264
        %v372 = vsel %vm370, %v337, 0
        %374 = vmatprep.subr.bf16.mxu0 0
        %375 = vmatpush1.bf16.msra.mxu0 %v362
        %376 = vmatprep.subr.bf16.mxu0 0
        %377 = vmatpush1.bf16.msra.mxu0 %v363
        %378 = vmatprep.subr.bf16.mxu0 0
        %379 = vmatpush1.bf16.msra.mxu0 %v364
        %380 = vmatprep.subr.bf16.mxu0 0
        %381 = vmatpush1.bf16.msra.mxu0 %v365
        %382 = vmatprep.subr.bf16.mxu0 0
        %383 = vmatpush1.bf16.msra.mxu0 0
        %384 = vmatprep.subr.bf16.mxu0 0
        %385 = vmatpush1.bf16.msra.mxu0 0
        %386 = vmatprep.subr.bf16.mxu0 0
        %387 = vmatpush1.bf16.msra.mxu0 0
        %388 = vmatprep.subr.bf16.mxu0 0
        %389 = vmatpush1.bf16.msra.mxu0 0
        %390 = vmatprep.subr.bf16.mxu0 0
        %391 = vmatpush1.bf16.msra.mxu0 0
        %392 = vmatprep.subr.bf16.mxu0 0
        %393 = vmatpush1.bf16.msra.mxu0 0
        %394 = vmatprep.subr.bf16.mxu0 0
        %395 = vmatpush1.bf16.msra.mxu0 0
        %396 = vmatprep.subr.bf16.mxu0 0
        %397 = vmatpush1.bf16.msra.mxu0 0
        %398 = vmatprep.subr.bf16.mxu0 0
        %399 = vmatpush1.bf16.msra.mxu0 0
        %400 = vmatprep.subr.bf16.mxu0 0
        %401 = vmatpush1.bf16.msra.mxu0 0
        %402 = vmatprep.subr.bf16.mxu0 0
        %403 = vmatpush1.bf16.msra.mxu0 0
        %404 = vmatprep.subr.bf16.mxu0 0
        %405 = vmatpush1.bf16.msra.mxu0 0
        %406 = vmatprep.mubr.bf16.mxu0 0
        %407 = vmatmul.mubr.bf16.gmra.mrb[0].mxu0 %v372
        %v408 = vpop.f32.mrb[0].mxu0
        %v409 = vadd.f32 0.0, %v408
        %v410 = vpop.f32.mrb[0].mxu0
        %v411 = vpop.f32.mrb[0].mxu0
        %v412 = vpop.f32.mrb[0].mxu0
        %413 = vdwg.mxu0
        %v414 = vld [vmem:[%s326] sm:$0xf]
        %v415 = vld [vmem:[%s326 + $0x4] sm:$0xf]
        %v416 = vld [vmem:[%s326 + $0x8] sm:$0xf]
        %v417 = vld [vmem:[%s326 + $0xc] sm:$0xf]
        %v418 = vld [vmem:[%s326 + $0x10] sm:$0xf]
        %v419 = vld [vmem:[%s326 + $0x14] sm:$0xf]
        %v420 = vld [vmem:[%s326 + $0x18] sm:$0xf]
        %v421 = vld [vmem:[%s326 + $0x1c] sm:$0xf]
        %v430 = vunpack.c.l.b16 %v414
        %v431 = vunpack.c.l.b16 %v415
        %v432 = vunpack.c.l.b16 %v416
        %v433 = vunpack.c.l.b16 %v417
        %v434 = vunpack.c.l.b16 %v418
        %v435 = vunpack.c.l.b16 %v419
        %v436 = vunpack.c.l.b16 %v420
        %v437 = vunpack.c.l.b16 %v421
        %v438 = vpack.c.b16 %v431, %v430
        %v439 = vpack.c.b16 %v433, %v432
        %v440 = vpack.c.b16 %v435, %v434
        %v441 = vpack.c.b16 %v437, %v436
        %446 = vmatprep.subr.bf16.mxu0 0
        %447 = vmatpush1.bf16.msra.mxu0 %v438
        %448 = vmatprep.subr.bf16.mxu0 0
        %449 = vmatpush1.bf16.msra.mxu0 %v439
        %450 = vmatprep.subr.bf16.mxu0 0
        %451 = vmatpush1.bf16.msra.mxu0 %v440
        %452 = vmatprep.subr.bf16.mxu0 0
        %453 = vmatpush1.bf16.msra.mxu0 %v441
        %454 = vmatprep.subr.bf16.mxu0 0
        %455 = vmatpush1.bf16.msra.mxu0 0
        %456 = vmatprep.subr.bf16.mxu0 0
        %457 = vmatpush1.bf16.msra.mxu0 0
        %458 = vmatprep.subr.bf16.mxu0 0
        %459 = vmatpush1.bf16.msra.mxu0 0
        %460 = vmatprep.subr.bf16.mxu0 0
        %461 = vmatpush1.bf16.msra.mxu0 0
        %462 = vmatprep.subr.bf16.mxu0 0
        %463 = vmatpush1.bf16.msra.mxu0 0
        %464 = vmatprep.subr.bf16.mxu0 0
        %465 = vmatpush1.bf16.msra.mxu0 0
        %466 = vmatprep.subr.bf16.mxu0 0
        %467 = vmatpush1.bf16.msra.mxu0 0
        %468 = vmatprep.subr.bf16.mxu0 0
        %469 = vmatpush1.bf16.msra.mxu0 0
        %470 = vmatprep.subr.bf16.mxu0 0
        %471 = vmatpush1.bf16.msra.mxu0 0
        %472 = vmatprep.subr.bf16.mxu0 0
        %473 = vmatpush1.bf16.msra.mxu0 0
        %474 = vmatprep.subr.bf16.mxu0 0
        %475 = vmatpush1.bf16.msra.mxu0 0
        %476 = vmatprep.subr.bf16.mxu0 0
        %477 = vmatpush1.bf16.msra.mxu0 0
        %478 = vmatprep.mubr.bf16.mxu0 0
        %479 = vmatmul.mubr.bf16.gmra.mrb[0].mxu0 %v372
        %v480 = vpop.f32.mrb[0].mxu0
        %v481 = vadd.f32 0.0, %v480
        %v482 = vpop.f32.mrb[0].mxu0
        %v483 = vpop.f32.mrb[0].mxu0
        %v484 = vpop.f32.mrb[0].mxu0
        %485 = vdwg.mxu0
        %v486 = vld [vmem:[%s331] sm:$0xf]
        %v487 = vld [vmem:[%s331 + $0x4] sm:$0xf]
        %v488 = vld [vmem:[%s331 + $0x8] sm:$0xf]
        %v489 = vld [vmem:[%s331 + $0xc] sm:$0xf]
        %v490 = vld [vmem:[%s331 + $0x10] sm:$0xf]
        %v491 = vld [vmem:[%s331 + $0x14] sm:$0xf]
        %v492 = vld [vmem:[%s331 + $0x18] sm:$0xf]
        %v493 = vld [vmem:[%s331 + $0x1c] sm:$0xf]
        %v502 = vunpack.c.l.b16 %v486
        %v503 = vunpack.c.l.b16 %v487
        %v504 = vunpack.c.l.b16 %v488
        %v505 = vunpack.c.l.b16 %v489
        %v506 = vunpack.c.l.b16 %v490
        %v507 = vunpack.c.l.b16 %v491
        %v508 = vunpack.c.l.b16 %v492
        %v509 = vunpack.c.l.b16 %v493
        %v510 = vpack.c.b16 %v503, %v502
        %v511 = vpack.c.b16 %v505, %v504
        %v512 = vpack.c.b16 %v507, %v506
        %v513 = vpack.c.b16 %v509, %v508
        %518 = vmatprep.subr.bf16.mxu0 0
        %519 = vmatpush1.bf16.msra.mxu0 %v510
        %520 = vmatprep.subr.bf16.mxu0 0
        %521 = vmatpush1.bf16.msra.mxu0 %v511
        %522 = vmatprep.subr.bf16.mxu0 0
        %523 = vmatpush1.bf16.msra.mxu0 %v512
        %524 = vmatprep.subr.bf16.mxu0 0
        %525 = vmatpush1.bf16.msra.mxu0 %v513
        %526 = vmatprep.subr.bf16.mxu0 0
        %527 = vmatpush1.bf16.msra.mxu0 0
        %528 = vmatprep.subr.bf16.mxu0 0
        %529 = vmatpush1.bf16.msra.mxu0 0
        %530 = vmatprep.subr.bf16.mxu0 0
        %531 = vmatpush1.bf16.msra.mxu0 0
        %532 = vmatprep.subr.bf16.mxu0 0
        %533 = vmatpush1.bf16.msra.mxu0 0
        %534 = vmatprep.subr.bf16.mxu0 0
        %535 = vmatpush1.bf16.msra.mxu0 0
        %536 = vmatprep.subr.bf16.mxu0 0
        %537 = vmatpush1.bf16.msra.mxu0 0
        %538 = vmatprep.subr.bf16.mxu0 0
        %539 = vmatpush1.bf16.msra.mxu0 0
        %540 = vmatprep.subr.bf16.mxu0 0
        %541 = vmatpush1.bf16.msra.mxu0 0
        %542 = vmatprep.subr.bf16.mxu0 0
        %543 = vmatpush1.bf16.msra.mxu0 0
        %544 = vmatprep.subr.bf16.mxu0 0
        %545 = vmatpush1.bf16.msra.mxu0 0
        %546 = vmatprep.subr.bf16.mxu0 0
        %547 = vmatpush1.bf16.msra.mxu0 0
        %548 = vmatprep.subr.bf16.mxu0 0
        %549 = vmatpush1.bf16.msra.mxu0 0
        %550 = vmatprep.mubr.bf16.mxu0 0
        %551 = vmatmul.mubr.bf16.gmra.mrb[0].mxu0 %v372
        %v552 = vpop.f32.mrb[0].mxu0
        %v553 = vadd.f32 0.0, %v552
        %v554 = vpop.f32.mrb[0].mxu0
        %v555 = vpop.f32.mrb[0].mxu0
        %v556 = vpop.f32.mrb[0].mxu0
        %557 = vdwg.mxu0
        %v558 = vmul.f32 %v409, 0.35355338
        %v559 = vpack.c.bf16 %v558, %v558
        %v560 = vpack.c.bf16 %v481, %v481
        %vm561 = vcmask 64512
        %v563 = vsel %vm561, %v559, 0
        %v566 = vsel %vm561, %v560, 0
        %568 = vmatprep.subr.bf16.mxu0 0
        %569 = vmatpush1.bf16.xpose.msra.mxu0 %v566
        %570 = vmatprep.subr.bf16.mxu0 0
        %571 = vmatpush1.bf16.xpose.msra.mxu0 0
        %572 = vmatprep.subr.bf16.mxu0 0
        %573 = vmatpush1.bf16.xpose.msra.mxu0 0
        %574 = vmatprep.subr.bf16.mxu0 0
        %575 = vmatpush1.bf16.xpose.msra.mxu0 0
        %576 = vmatprep.subr.bf16.mxu0 0
        %577 = vmatpush1.bf16.xpose.msra.mxu0 0
        %578 = vmatprep.subr.bf16.mxu0 0
        %579 = vmatpush1.bf16.xpose.msra.mxu0 0
        %580 = vmatprep.subr.bf16.mxu0 0
        %581 = vmatpush1.bf16.xpose.msra.mxu0 0
        %582 = vmatprep.subr.bf16.mxu0 0
        %583 = vmatpush1.bf16.xpose.msra.mxu0 0
        %584 = vmatprep.subr.bf16.mxu0 0
        %585 = vmatpush1.bf16.xpose.msra.mxu0 0
        %586 = vmatprep.subr.bf16.mxu0 0
        %587 = vmatpush1.bf16.xpose.msra.mxu0 0
        %588 = vmatprep.subr.bf16.mxu0 0
        %589 = vmatpush1.bf16.xpose.msra.mxu0 0
        %590 = vmatprep.subr.bf16.mxu0 0
        %591 = vmatpush1.bf16.xpose.msra.mxu0 0
        %592 = vmatprep.subr.bf16.mxu0 0
        %593 = vmatpush1.bf16.xpose.msra.mxu0 0
        %594 = vmatprep.subr.bf16.mxu0 0
        %595 = vmatpush1.bf16.xpose.msra.mxu0 0
        %596 = vmatprep.subr.bf16.mxu0 0
        %597 = vmatpush1.bf16.xpose.msra.mxu0 0
        %598 = vmatprep.subr.bf16.mxu0 0
        %599 = vmatpush1.bf16.xpose.msra.mxu0 0
        %600 = vmatprep.mubr.bf16.mxu0 0
        %601 = vmatmul.mubr.bf16.gmra.mrb[0].mxu0 %v563
        %v602 = vpop.f32.mrb[0].mxu0
        %v603 = vadd.f32 0.0, %v602
        %v604 = vpop.f32.mrb[0].mxu0
        %v605 = vpop.f32.mrb[0].mxu0
        %v606 = vpop.f32.mrb[0].mxu0
        %607 = vdwg.mxu0
        %v608 = vsel %vm561, %v603, -inf
        %609 = vmax.xlane.f32.xlu0 %v608
        %v610 = vpop.xlane.xlu0 %609
        %v611 = vsub.f32 %v603, %v610
        %v612 = vmul.f32 %v611, 1.442695
        %v613 = vpow.pop %v612
        %v614 = vsel %vm561, %v613, 0.0
        %615 = vadd.xlane.f32.xlu0 %v614
        %v616 = vpop.xlane.xlu0 %615
        %v617 = vrcp.pop %v616
        %v618 = vmul.f32 %v613, %v617
        %v619 = vpack.c.bf16 %v618, %v618
        %v620 = vpack.c.bf16 %v553, %v553
        %v622 = vsel %vm561, %v619, 0
        %vm624 = vcmask 1043456
        %v626 = vsel %vm624, %v620, 0
        %628 = vmatprep.subr.bf16.mxu0 0
        %629 = vmatpush1.bf16.msra.mxu0 %v626
        %630 = vmatprep.subr.bf16.mxu0 0
        %631 = vmatpush1.bf16.msra.mxu0 0
        %632 = vmatprep.subr.bf16.mxu0 0
        %633 = vmatpush1.bf16.msra.mxu0 0
        %634 = vmatprep.subr.bf16.mxu0 0
        %635 = vmatpush1.bf16.msra.mxu0 0
        %636 = vmatprep.subr.bf16.mxu0 0
        %637 = vmatpush1.bf16.msra.mxu0 0
        %638 = vmatprep.subr.bf16.mxu0 0
        %639 = vmatpush1.bf16.msra.mxu0 0
        %640 = vmatprep.subr.bf16.mxu0 0
        %641 = vmatpush1.bf16.msra.mxu0 0
        %642 = vmatprep.subr.bf16.mxu0 0
        %643 = vmatpush1.bf16.msra.mxu0 0
        %644 = vmatprep.subr.bf16.mxu0 0
        %645 = vmatpush1.bf16.msra.mxu0 0
        %646 = vmatprep.subr.bf16.mxu0 0
        %647 = vmatpush1.bf16.msra.mxu0 0
        %648 = vmatprep.subr.bf16.mxu0 0
        %649 = vmatpush1.bf16.msra.mxu0 0
        %650 = vmatprep.subr.bf16.mxu0 0
        %651 = vmatpush1.bf16.msra.mxu0 0
        %652 = vmatprep.subr.bf16.mxu0 0
        %653 = vmatpush1.bf16.msra.mxu0 0
        %654 = vmatprep.subr.bf16.mxu0 0
        %655 = vmatpush1.bf16.msra.mxu0 0
        %656 = vmatprep.subr.bf16.mxu0 0
        %657 = vmatpush1.bf16.msra.mxu0 0
        %658 = vmatprep.subr.bf16.mxu0 0
        %659 = vmatpush1.bf16.msra.mxu0 0
        %660 = vmatprep.mubr.bf16.mxu0 0
        %661 = vmatmul.mubr.bf16.gmra.mrb[0].mxu0 %v622
        %v662 = vpop.f32.mrb[0].mxu0
        %v663 = vadd.f32 0.0, %v662
        %v664 = vpop.f32.mrb[0].mxu0
        %v665 = vpop.f32.mrb[0].mxu0
        %v666 = vpop.f32.mrb[0].mxu0
        %667 = vdwg.mxu0
        %p668 = scmp.eq.s32.totalorder %s25, 0
        // Predicated region
        $region45: #{attention_forward.1} parent=43 // pred_check
          %p669 = pneg %p668
        $region46: #{attention_forward.1} parent=43 // pred_check_branch
          %671 = sbr.rel (%p669) target = $region48
        $region47: #{attention_forward.1} parent=43 // pred_region
          %672 = vst.msk [vmem:[#allocation2] sm:$0xff] %vm370, 0.0
        $region48: #{attention_forward.1} parent=43 // pred_fallthru
          _
        %v673 = vld [vmem:[#allocation2] sm:$0xff]
        %v674 = vpack.c.bf16 %v663, %v663
        %v675 = vld [vmem:[%s335] sm:$0xf]
        %v677 = vsel %vm561, %v674, 0
        %v680 = vsel %vm624, %v675, 0
        %682 = vmatprep.subr.bf16.mxu0 0
        %683 = vmatpush1.bf16.msra.mxu0 %v680
        %684 = vmatprep.subr.bf16.mxu0 0
        %685 = vmatpush1.bf16.msra.mxu0 0
        %686 = vmatprep.subr.bf16.mxu0 0
        %687 = vmatpush1.bf16.msra.mxu0 0
        %688 = vmatprep.subr.bf16.mxu0 0
        %689 = vmatpush1.bf16.msra.mxu0 0
        %690 = vmatprep.subr.bf16.mxu0 0
        %691 = vmatpush1.bf16.msra.mxu0 0
        %692 = vmatprep.subr.bf16.mxu0 0
        %693 = vmatpush1.bf16.msra.mxu0 0
        %694 = vmatprep.subr.bf16.mxu0 0
        %695 = vmatpush1.bf16.msra.mxu0 0
        %696 = vmatprep.subr.bf16.mxu0 0
        %697 = vmatpush1.bf16.msra.mxu0 0
        %698 = vmatprep.subr.bf16.mxu0 0
        %699 = vmatpush1.bf16.msra.mxu0 0
        %700 = vmatprep.subr.bf16.mxu0 0
        %701 = vmatpush1.bf16.msra.mxu0 0
        %702 = vmatprep.subr.bf16.mxu0 0
        %703 = vmatpush1.bf16.msra.mxu0 0
        %704 = vmatprep.subr.bf16.mxu0 0
        %705 = vmatpush1.bf16.msra.mxu0 0
        %706 = vmatprep.subr.bf16.mxu0 0
        %707 = vmatpush1.bf16.msra.mxu0 0
        %708 = vmatprep.subr.bf16.mxu0 0
        %709 = vmatpush1.bf16.msra.mxu0 0
        %710 = vmatprep.subr.bf16.mxu0 0
        %711 = vmatpush1.bf16.msra.mxu0 0
        %712 = vmatprep.subr.bf16.mxu0 0
        %713 = vmatpush1.bf16.msra.mxu0 0
        %714 = vmatprep.mubr.bf16.mxu0 0
        %715 = vmatmul.mubr.bf16.gmra.mrb[0].mxu0 %v677
        %v716 = vpop.f32.mrb[0].mxu0
        %v717 = vadd.f32 0.0, %v716
        %v718 = vpop.f32.mrb[0].mxu0
        %v719 = vpop.f32.mrb[0].mxu0
        %v720 = vpop.f32.mrb[0].mxu0
        %721 = vdwg.mxu0
        %v722 = vadd.f32 %v673, %v717
        %723 = vst.msk [vmem:[#allocation2] sm:$0xff] %vm370, %v722
        %p724 = scmp.eq.s32.totalorder %s25, 7
        // Predicated region
        $region49: #{attention_forward.1} parent=43 // pred_check
          %p725 = pneg %p724
        $region50: #{attention_forward.1} parent=43 // pred_check_branch
          %727 = sbr.rel (%p725) target = $region52
        $region51: #{attention_forward.1} parent=43 // pred_region
          %v728 = vld [vmem:[#allocation2] sm:$0xff]
          %v729 = vld [vmem:[%s5] sm:$0x1]
          %v731 = vlaneseq
          %v732 = vshrl.u32 %v731, 7
          %v733 = vsub.s32 0, %v732
          %v734 = vrot.slane %v729, %v733
          %v736 = vadd.f32 %v728, %v734
          %737 = vst.msk [vmem:[%s312] sm:$0xff] %vm370, %v736
        $region52: #{attention_forward.1} parent=43 // pred_fallthru
          _
        %s738 = sand.u32 %s191, 1
        %s739 = scalar_lea.sflag [#allocation4], %s738
        %s740 = sand.u32 %s191, 1
        %s741 = smul.addr %s740, 8
        %s742 = scalar_lea.vmem [#allocation3], %s741
        // Predicated region
        $region53: #{attention_forward.1} parent=43 // pred_check
          %p743 = pneg %p201
        $region54: #{attention_forward.1} parent=43 // pred_check_branch
          %745 = sbr.rel (%p743) target = $region56
        $region55: #{attention_forward.1} parent=43 // pred_region
          %s747 = ssub.s32 128, 128
          %748 = vsyncadd %s739, %s747
          %s749 = smul.addr %s24, 128
          %s750 = scalar_lea.hbm %s6, %s749
          %s752 = sshll.u32 %s742, 4
          %s753 = int_to_ptr.vmem [resolvable:$true] %s752
          %755 = dma.vmem_to_hbm [thread:$0]  %s753, 128, %s750, %s739
        $region56: #{attention_forward.1} parent=43 // pred_fallthru
          _
      $region44: #{attention_forward.1} parent=5 // pred_fallthru
        _
      %p756 = scmp.le.s32.totalorder 2, %s15
      // Predicated region
      $region57: #{attention_forward.1} parent=5 // pred_check
        %p757 = pneg %p756
      $region58: #{attention_forward.1} parent=5 // pred_check_branch
        %759 = sbr.rel (%p757) target = $region60
      $region59: #{attention_forward.1} parent=5 // pred_region
        %s760 = ssub.s32 %s15, 2
        // Predicated region
        $region61: #{attention_forward.1} parent=59 // pred_check
          %p761 = pneg %p207
        $region62: #{attention_forward.1} parent=59 // pred_check_branch
          %763 = sbr.rel (%p761) target = $region64
        $region63: #{attention_forward.1} parent=59 // pred_region
          %s764 = sand.u32 %s192, 1
          %s765 = scalar_lea.sflag [#allocation4], %s764
          %s766 = sand.u32 %s192, 1
          %s767 = smul.addr %s766, 8
          %s768 = scalar_lea.vmem [#allocation3], %s767
          %769 = dma.done %s765, 128
        $region64: #{attention_forward.1} parent=59 // pred_fallthru
          _
      $region60: #{attention_forward.1} parent=5 // pred_fallthru
        _
    $region6: #{attention_forward.1} parent=1 // loop_footer
      %s19 = sadd.s32 1, %s15
    $region7: #{attention_forward.1} parent=1 // loop_footer_branch
      %14 = sbr.rel target = $region3
    $region8: #{attention_forward.1} parent=1 // loop_exit
      _
    %770 = vsyncpa [#allocation4], 1
    %s771 = scalar_lea.sflag [#allocation4], 1
    %772 = vsyncpa %s771, 1

</llo_original>
